<compile_context>
chip_gen: v7x
topology: tpu7x:2x2x1
jax: 0.10.0
libtpu: 0.0.40
codegen_flags: <defaults>
</compile_context>

<pallas_src>
import functools

import jax
import jax.numpy as jnp
import numpy as np
from jax import lax
from jax.experimental import pallas as pl
from jax.experimental.pallas import tpu as pltpu


def fused_predictor_kernel(xcol_ref, w3_ref, scale_ref, shift_ref,
                           w1_ref, b1_ref, o_ref, *, num_class):
    """One grid step = one (image, pixel-band) tile.

    xcol_ref : (1, TP, 9*Cin)          bf16  im2col patches for this band
    w3_ref   : (9*Cin, Cmid_total)     bf16  all 3x3 convs concatenated on Cout
    scale_ref, shift_ref : (1, Cmid_total) f32  folded eval-BN per branch
    w1_ref   : (Cmid_total, Cout_pad)  bf16  block-diagonal concat of all 1x1 heads
    b1_ref   : (1, Cout_pad)           f32
    o_ref    : (1, Cout_pad, TP)       f32   channel-major (lane-dense) output
    """
    x = xcol_ref[0]                                            # (TP, 9*Cin) bf16
    # conv3x3 for all branches at once: single K = 9*Cin matmul, f32 accumulation.
    pre = jnp.dot(x, w3_ref[...], preferred_element_type=jnp.float32)
    # eval-mode BN (folded) + ReLU, in f32.
    pre = jnp.maximum(pre * scale_ref[...] + shift_ref[...], 0.0)
    # all 1x1 heads at once (block-diagonal weights) + bias.
    out = jnp.dot(pre.astype(jnp.bfloat16), w1_ref[...],
                  preferred_element_type=jnp.float32) + b1_ref[...]
    # sigmoid_hm on the class channels only (first num_class columns).
    col = lax.broadcasted_iota(jnp.int32, out.shape, 1)
    sig = jnp.clip(jax.nn.sigmoid(out), 1e-4, 1.0 - 1e-4)
    out = jnp.where(col < num_class, sig, out)
    # Channel-major store: H*W sits on the lane dim (dense vst), and the wrapper
    # reshape to NCHW is free.
    o_ref[0] = jnp.transpose(out, (1, 0)).astype(o_ref.dtype)


def _pick_pixel_tile(hw, cap):
    """Largest pixel-band size: whole image if small, else a 128-multiple divisor."""
    if hw <= cap:
        return hw
    for t in range(cap - cap % 128, 0, -128):
        if hw % t == 0:
            return t
    return hw


def monoflex_forward(features, params, targets=None, max_pixels_per_block=2048):
    """features: NCHW float32. Returns {'cls': NCHW, 'reg': NCHW} like the PyTorch module."""
    del targets  # only used by the EDGE_FUSION branch (not implemented)
    N, Cin, H, W = features.shape
    HW = H * W

    # ---- fold the 4 branches (cls + reg groups) into one fused weight set ----
    heads = [params['cls']] + list(params['reg_groups'])
    head_conv = heads[0]['w3'].shape[3]
    Cmid_total = len(heads) * head_conv
    w3_all = jnp.concatenate([h['w3'] for h in heads], axis=3)        # (3,3,Cin,Cmid_total)
    scale_all = jnp.concatenate([h['scale'] for h in heads], axis=1)  # (1, Cmid_total)
    shift_all = jnp.concatenate([h['shift'] for h in heads], axis=1)
    couts = [h['w1'].shape[1] for h in heads]
    num_class = int(couts[0])
    Cout_total = int(sum(couts))
    Cout_pad = ((Cout_total + 7) // 8) * 8
    w1_all = jnp.zeros((Cmid_total, Cout_pad), jnp.float32)           # block-diagonal 1x1 heads
    b1_all = jnp.zeros((1, Cout_pad), jnp.float32)
    col = 0
    for i, h in enumerate(heads):
        c = int(couts[i])
        w1_all = w1_all.at[i * head_conv:(i + 1) * head_conv, col:col + c].set(h['w1'])
        b1_all = b1_all.at[:, col:col + c].set(h['b1'])
        col += c

    # ---- im2col in the wrapper: the kernel does one K = 9*Cin contraction ----
    x = jnp.transpose(features, (0, 2, 3, 1)).astype(jnp.float32)     # NHWC
    xpad = jnp.pad(x, ((0, 0), (1, 1), (1, 1), (0, 0)))
    patches = [xpad[:, ky:ky + H, kx:kx + W, :] for ky in range(3) for kx in range(3)]
    xcol = jnp.concatenate(patches, axis=-1).reshape(N, HW, 9 * Cin).astype(jnp.bfloat16)
    w3r = w3_all.reshape(9 * Cin, Cmid_total).astype(jnp.bfloat16)    # (ky,kx,c) order matches xcol
    w1b = w1_all.astype(jnp.bfloat16)

    TP = _pick_pixel_tile(HW, max_pixels_per_block)
    num_bands = HW // TP
    K = 9 * Cin

    kern = functools.partial(fused_predictor_kernel, num_class=num_class)
    out_cmaj = pl.pallas_call(
        kern,
        out_shape=jax.ShapeDtypeStruct((N, Cout_pad, HW), jnp.float32),
        grid=(N, num_bands),
        in_specs=[
            pl.BlockSpec((1, TP, K), lambda n, b: (n, b, 0)),
            pl.BlockSpec((K, Cmid_total), lambda n, b: (0, 0)),
            pl.BlockSpec((1, Cmid_total), lambda n, b: (0, 0)),
            pl.BlockSpec((1, Cmid_total), lambda n, b: (0, 0)),
            pl.BlockSpec((Cmid_total, Cout_pad), lambda n, b: (0, 0)),
            pl.BlockSpec((1, Cout_pad), lambda n, b: (0, 0)),
        ],
        out_specs=pl.BlockSpec((1, Cout_pad, TP), lambda n, b: (n, 0, b)),
        compiler_params=pltpu.CompilerParams(
            dimension_semantics=("parallel", "parallel")),
    )(xcol, w3r, scale_all, shift_all, w1b, b1_all)

    # (N, Cout_pad, H*W) -> NCHW outputs via cheap slice + reshape (no transpose).
    cls = out_cmaj[:, :num_class, :].reshape(N, num_class, H, W)
    reg = out_cmaj[:, num_class:Cout_total, :].reshape(N, Cout_total - num_class, H, W)
    return {'cls': cls, 'reg': reg}


def make_params(key, in_channels, head_conv, num_class,
                reg_head_items, reg_head_chans, init_p=0.01, bn_eps=1e-5):
    """Deterministic synthetic parameters matching the module's __init__ shapes."""
    keys = iter(jax.random.split(key, 64))
    nxt = lambda: next(keys)

    def conv3_w():  # HWIO, i.e. torch (Cout, Cin, 3, 3) permuted to (3, 3, Cin, Cout)
        return (0.05 * jax.random.normal(nxt(), (3, 3, in_channels, head_conv))
                ).astype(jnp.float32)

    def bn_fold():  # eval-mode BN folded to per-channel scale / shift
        gamma = 1.0 + 0.1 * jax.random.normal(nxt(), (head_conv,))
        beta = 0.1 * jax.random.normal(nxt(), (head_conv,))
        mean = 0.05 * jax.random.normal(nxt(), (head_conv,))
        var = 1.0 + 0.1 * jax.random.uniform(nxt(), (head_conv,))
        scale = gamma / jnp.sqrt(var + bn_eps)
        shift = beta - mean * scale
        return scale[None].astype(jnp.float32), shift[None].astype(jnp.float32)

    cls = {'w3': conv3_w()}
    cls['scale'], cls['shift'] = bn_fold()
    cls['w1'] = (0.05 * jax.random.normal(nxt(), (head_conv, num_class))).astype(jnp.float32)
    # cls_head[-1].bias.data.fill_(-log(1/INIT_P - 1))
    cls['b1'] = jnp.full((1, num_class), -float(np.log(1.0 / init_p - 1.0)), jnp.float32)

    reg_groups = []
    for items, chans in zip(reg_head_items, reg_head_chans):
        g = {'w3': conv3_w()}
        g['scale'], g['shift'] = bn_fold()
        w1_parts = []
        for name, c in zip(items, chans):
            # uncertainty heads: xavier_normal_(gain=0.01)-style tiny init
            std = 0.001 if 'uncertainty' in name else 0.05
            w1_parts.append(std * jax.random.normal(nxt(), (head_conv, c)))
        g['w1'] = jnp.concatenate(w1_parts, axis=1).astype(jnp.float32)
        g['b1'] = jnp.zeros((1, int(sum(chans))), jnp.float32)  # fill_fc_weights(value=0)
        reg_groups.append(g)

    return {'cls': cls, 'reg_groups': reg_groups}


def reference_forward(features, params):
    """Pure-JAX reference with the same bf16-inputs / f32-accumulation precision."""
    x = jnp.transpose(features, (0, 2, 3, 1)).astype(jnp.float32)
    xb = x.astype(jnp.bfloat16)

    def head(p, apply_sigmoid):
        y = lax.conv_general_dilated(
            xb, p['w3'].astype(jnp.bfloat16), (1, 1), 'SAME',
            dimension_numbers=('NHWC', 'HWIO', 'NHWC'),
            preferred_element_type=jnp.float32)
        y = jnp.maximum(y * p['scale'][0] + p['shift'][0], 0.0)
        o = jnp.einsum('nhwc,co->nhwo', y.astype(jnp.bfloat16),
                       p['w1'].astype(jnp.bfloat16),
                       preferred_element_type=jnp.float32) + p['b1'][0]
        if apply_sigmoid:
            o = jnp.clip(jax.nn.sigmoid(o), 1e-4, 1.0 - 1e-4)
        return jnp.transpose(o, (0, 3, 1, 2))

    cls = head(params['cls'], True)
    reg = jnp.concatenate([head(g, False) for g in params['reg_groups']], axis=1)
    return {'cls': cls, 'reg': reg}


if __name__ == "__main__":
    # Small synthetic config consistent with the module:
    N, Cin, H, W = 2, 16, 16, 16          # batch, in_channels, output_h, output_w
    head_conv = 32                         # cfg.MODEL.HEAD.NUM_CHANNEL
    num_class = 3                          # len(cfg.DATASETS.CLASS_NAMES)
    reg_head_items = (("offset_2d", "size_2d"),
                      ("offset_3d", "size_3d"),
                      ("ori_cls", "ori_offset", "depth", "depth_uncertainty"))
    reg_head_chans = ((2, 2), (2, 3), (8, 8, 1, 1))   # total reg channels = 27

    key = jax.random.PRNGKey(0)
    k_feat, k_param = jax.random.split(key)
    features = jax.random.normal(k_feat, (N, Cin, H, W), jnp.float32)
    params = make_params(k_param, Cin, head_conv, num_class,
                         reg_head_items, reg_head_chans)

    # max_pixels_per_block=128 forces 2 pixel-bands per image so the spatial grid
    # axis is exercised even at this toy resolution (default 2048 for real sizes).
    out = monoflex_forward(features, params, max_pixels_per_block=128)
    out = jax.block_until_ready(out)

    ref = reference_forward(features, params)
    np.testing.assert_allclose(np.asarray(out['cls']), np.asarray(ref['cls']),
                               rtol=5e-3, atol=5e-3)
    np.testing.assert_allclose(np.asarray(out['reg']), np.asarray(ref['reg']),
                               rtol=5e-3, atol=5e-3)
    assert out['cls'].shape == (N, num_class, H, W)
    assert out['reg'].shape == (N, 27, H, W)
    print("KERNEL_OK")
</pallas_src>

<mosaic_0001>
module attributes {stable_mosaic.version = 11 : i64} {
  func.func @fused_predictor_kernel(%arg0: i32, %arg1: i32, %arg2: memref<1x128x144xbf16, #tpu.memory_space<vmem>>, %arg3: memref<144x128xbf16, #tpu.memory_space<vmem>>, %arg4: memref<1x128xf32, #tpu.memory_space<vmem>>, %arg5: memref<1x128xf32, #tpu.memory_space<vmem>>, %arg6: memref<128x32xbf16, #tpu.memory_space<vmem>>, %arg7: memref<1x32xf32, #tpu.memory_space<vmem>>, %arg8: memref<1x32x128xf32, #tpu.memory_space<vmem>>) attributes {dimension_semantics = [#tpu.dimension_semantics<parallel>, #tpu.dimension_semantics<parallel>], iteration_bounds = array<i64: 2, 2>, scalar_prefetch = 0 : i64, scratch_operands = 0 : i64, tpu.core_type = #tpu.core_type<tc>, window_params = [{transform_indices = @transform_0, window_bounds = array<i64: 1, 128, 144>}, {pipeline_mode = #tpu.pipeline_mode<synchronous>, transform_indices = @transform_1, window_bounds = array<i64: 144, 128>}, {pipeline_mode = #tpu.pipeline_mode<synchronous>, transform_indices = @transform_2, window_bounds = array<i64: 1, 128>}, {pipeline_mode = #tpu.pipeline_mode<synchronous>, transform_indices = @transform_3, window_bounds = array<i64: 1, 128>}, {pipeline_mode = #tpu.pipeline_mode<synchronous>, transform_indices = @transform_4, window_bounds = array<i64: 128, 32>}, {pipeline_mode = #tpu.pipeline_mode<synchronous>, transform_indices = @transform_5, window_bounds = array<i64: 1, 32>}, {transform_indices = @transform_6, window_bounds = array<i64: 1, 32, 128>}]} {
    %c0 = arith.constant 0 : index
    %c0_0 = arith.constant 0 : index
    %c0_1 = arith.constant 0 : index
    %0 = vector.load %arg2[%c0, %c0_0, %c0_1] : memref<1x128x144xbf16, #tpu.memory_space<vmem>>, vector<1x128x144xbf16>
    %1 = vector.shape_cast %0 : vector<1x128x144xbf16> to vector<128x144xbf16>
    %c0_2 = arith.constant 0 : index
    %c0_3 = arith.constant 0 : index
    %2 = vector.load %arg3[%c0_2, %c0_3] : memref<144x128xbf16, #tpu.memory_space<vmem>>, vector<144x128xbf16>
    %cst = arith.constant dense<0.000000e+00> : vector<128x128xf32>
    %3 = tpu.matmul %1, %2, %cst {dimension_numbers = #tpu.dot_dimension_numbers<[1], [0], [0], [1], [0, 0, 1, 1], [], []>} : vector<128x144xbf16>, vector<144x128xbf16>, vector<128x128xf32> -> vector<128x128xf32>
    %c0_4 = arith.constant 0 : index
    %c0_5 = arith.constant 0 : index
    %4 = vector.load %arg4[%c0_4, %c0_5] : memref<1x128xf32, #tpu.memory_space<vmem>>, vector<1x128xf32>
    %5 = vector.broadcast %4 : vector<1x128xf32> to vector<128x128xf32>
    %6 = arith.mulf %3, %5 : vector<128x128xf32>
    %c0_6 = arith.constant 0 : index
    %c0_7 = arith.constant 0 : index
    %7 = vector.load %arg5[%c0_6, %c0_7] : memref<1x128xf32, #tpu.memory_space<vmem>>, vector<1x128xf32>
    %8 = vector.broadcast %7 : vector<1x128xf32> to vector<128x128xf32>
    %9 = arith.addf %6, %8 : vector<128x128xf32>
    %cst_8 = arith.constant 0.000000e+00 : f32
    %10 = vector.broadcast %cst_8 : f32 to vector<128x128xf32>
    %11 = arith.maximumf %9, %10 : vector<128x128xf32>
    %12 = arith.truncf %11 : vector<128x128xf32> to vector<128x128xbf16>
    %c0_9 = arith.constant 0 : index
    %c0_10 = arith.constant 0 : index
    %13 = vector.load %arg6[%c0_9, %c0_10] : memref<128x32xbf16, #tpu.memory_space<vmem>>, vector<128x32xbf16>
    %cst_11 = arith.constant dense<0.000000e+00> : vector<128x32xf32>
    %14 = tpu.matmul %12, %13, %cst_11 {dimension_numbers = #tpu.dot_dimension_numbers<[1], [0], [0], [1], [0, 0, 1, 1], [], []>} : vector<128x128xbf16>, vector<128x32xbf16>, vector<128x32xf32> -> vector<128x32xf32>
    %c0_12 = arith.constant 0 : index
    %c0_13 = arith.constant 0 : index
    %15 = vector.load %arg7[%c0_12, %c0_13] : memref<1x32xf32, #tpu.memory_space<vmem>>, vector<1x32xf32>
    %16 = vector.broadcast %15 : vector<1x32xf32> to vector<128x32xf32>
    %17 = arith.addf %14, %16 : vector<128x32xf32>
    %18 = tpu.iota {dimensions = array<i32: 1>} : vector<128x32xi32>
    %19 = arith.negf %17 : vector<128x32xf32>
    %20 = math.exp %19 : vector<128x32xf32>
    %cst_14 = arith.constant 1.000000e+00 : f32
    %21 = vector.broadcast %cst_14 : f32 to vector<128x32xf32>
    %22 = arith.addf %21, %20 : vector<128x32xf32>
    %23 = arith.divf %21, %22 : vector<128x32xf32>
    %cst_15 = arith.constant 9.99999974E-5 : f32
    %cst_16 = arith.constant 0.999899983 : f32
    %24 = vector.broadcast %cst_15 : f32 to vector<128x32xf32>
    %25 = arith.maximumf %24, %23 : vector<128x32xf32>
    %26 = vector.broadcast %cst_16 : f32 to vector<128x32xf32>
    %27 = arith.minimumf %26, %25 : vector<128x32xf32>
    %c3_i32 = arith.constant 3 : i32
    %28 = vector.broadcast %c3_i32 : i32 to vector<128x32xi32>
    %29 = arith.cmpi slt, %18, %28 : vector<128x32xi32>
    %30 = arith.select %29, %27, %17 : vector<128x32xi1>, vector<128x32xf32>
    %31 = tpu.transpose %30, [1, 0] : vector<128x32xf32> -> vector<32x128xf32>
    %c0_17 = arith.constant 0 : index
    %c0_18 = arith.constant 0 : index
    %c0_19 = arith.constant 0 : index
    %32 = vector.load %arg8[%c0_17, %c0_18, %c0_19] : memref<1x32x128xf32, #tpu.memory_space<vmem>>, vector<1x32x128xf32>
    %33 = vector.shape_cast %32 : vector<1x32x128xf32> to vector<32x128xf32>
    %34 = vector.shape_cast %31 : vector<32x128xf32> to vector<1x32x128xf32>
    tpu.vector_store %arg8[%c0_17, %c0_18, %c0_19], %34 {strides = array<i32>} : memref<1x32x128xf32, #tpu.memory_space<vmem>>, vector<1x32x128xf32>,
    return
  }
  func.func @transform_0(%arg0: i32, %arg1: i32) -> (i32, i32, i32) {
    %c0_i32 = arith.constant 0 : i32
    %c0_i32_0 = arith.constant 0 : i32
    return %arg0, %arg1, %c0_i32 : i32, i32, i32
  }
  func.func @transform_1(%arg0: i32, %arg1: i32) -> (i32, i32) {
    %c0_i32 = arith.constant 0 : i32
    %c0_i32_0 = arith.constant 0 : i32
    %c0_i32_1 = arith.constant 0 : i32
    return %c0_i32, %c0_i32_0 : i32, i32
  }
  func.func @transform_2(%arg0: i32, %arg1: i32) -> (i32, i32) {
    %c0_i32 = arith.constant 0 : i32
    %c0_i32_0 = arith.constant 0 : i32
    %c0_i32_1 = arith.constant 0 : i32
    return %c0_i32, %c0_i32_0 : i32, i32
  }
  func.func @transform_3(%arg0: i32, %arg1: i32) -> (i32, i32) {
    %c0_i32 = arith.constant 0 : i32
    %c0_i32_0 = arith.constant 0 : i32
    %c0_i32_1 = arith.constant 0 : i32
    return %c0_i32, %c0_i32_0 : i32, i32
  }
  func.func @transform_4(%arg0: i32, %arg1: i32) -> (i32, i32) {
    %c0_i32 = arith.constant 0 : i32
    %c0_i32_0 = arith.constant 0 : i32
    %c0_i32_1 = arith.constant 0 : i32
    return %c0_i32, %c0_i32_0 : i32, i32
  }
  func.func @transform_5(%arg0: i32, %arg1: i32) -> (i32, i32) {
    %c0_i32 = arith.constant 0 : i32
    %c0_i32_0 = arith.constant 0 : i32
    %c0_i32_1 = arith.constant 0 : i32
    return %c0_i32, %c0_i32_0 : i32, i32
  }
  func.func @transform_6(%arg0: i32, %arg1: i32) -> (i32, i32, i32) {
    %c0_i32 = arith.constant 0 : i32
    %c0_i32_0 = arith.constant 0 : i32
    return %arg0, %c0_i32, %arg1 : i32, i32, i32
  }
}

</mosaic_0001>

<llo_original>
// kernel: tpu_custom_call.1
$region0: #{tpu_custom_call.1}
  #allocation0 [shape = 'u32[]', space=smem, size = 0x4, offset = 0x4, fixed_abs, tag = 'smem constant byte address 0x4 - core index']
  #allocation1 [shape = 'u32[144,128]{1,0:T(1,128)}', space=vmem, size = 0x12000, scoped, tag = 'internal scratch']
  %s0 = inlined_call_operand.vmem [shape: bf16[2,256,144], index: 0, kind: input, shape index: {}]
  %s1 = inlined_call_operand.vmem [shape: bf16[144,128], index: 1, kind: input, shape index: {}]
  %s2 = inlined_call_operand.vmem [shape: f32[1,128], index: 2, kind: input, shape index: {}]
  %s3 = inlined_call_operand.vmem [shape: f32[1,128], index: 3, kind: input, shape index: {}]
  %s4 = inlined_call_operand.vmem [shape: bf16[128,32], index: 4, kind: input, shape index: {}]
  %s5 = inlined_call_operand.vmem [shape: f32[1,32], index: 5, kind: input, shape index: {}]
  %s6 = inlined_call_operand.hbm [shape: f32[2,32,256], index: 6, kind: output, shape index: {}]
  %s7 = sld [smem:[#allocation0]]
  $region57: #{tpu_custom_call.1} parent=0
    _
  %s9 = ssub.s32 1, %s7
  %s10 = scalar_select 0, %s9, %s7
  $region1: #{tpu_custom_call.1} parent=0
    #allocation2 [shape = 'u8[32768]{0}', space=vmem, size = 0x8000, scoped, tag = 'output window, operand 0']
    #allocation3 [shape = 's32[2]{0}', space=sflag, size = 0x8, scoped, tag = 'scoped memory for tpu_custom_call.1']
    %11 = vsyncpa [#allocation3], 0
    %s12 = scalar_lea.sflag [#allocation3], 1
    %13 = vsyncpa %s12, 0
    loop: start=0, step=1, limit=6
    $region2: #{tpu_custom_call.1} parent=1 // loop_pre_header
      _
    $region3: #{tpu_custom_call.1} parent=1 // loop_header
      %s15 = sphi 0, %s19
      %p16 = scmp.ge.s32.totalorder %s15, 6
      %s22 = sphi 0, %s34
      %s23 = sphi 0, %s30
      %s24 = sphi 0, %s22
      %s25 = sphi 0, %s23
      %s26 = sphi 0, %s24
      %s27 = sphi 0, %s25
      %s39 = sphi 0, %s41
      %s42 = sphi 0, %s39
      %s43 = sphi 0, %s42
      %s59 = sphi 0, %s43
      %s63 = sphi 0, %s63
      %s65 = sphi 0, %s63
      %s66 = sphi 0, %s65
      %s80 = sphi 0, %s66
      %s84 = sphi 0, %s84
      %s86 = sphi 0, %s84
      %s87 = sphi 0, %s86
      %s101 = sphi 0, %s87
      %s105 = sphi 0, %s105
      %s107 = sphi 0, %s105
      %s108 = sphi 0, %s107
      %s122 = sphi 0, %s108
      %s126 = sphi 0, %s126
      %s128 = sphi 0, %s126
      %s129 = sphi 0, %s128
      %s143 = sphi 0, %s129
      %s147 = sphi 0, %s147
      %s149 = sphi 0, %s147
      %s150 = sphi 0, %s149
      %s164 = sphi 0, %s150
      %s172 = sphi 0, %s174
      %s175 = sphi 0, %s172
      %s176 = sphi 0, %s175
      %s192 = sphi 0, %s176
    $region4: #{tpu_custom_call.1} parent=1 // loop_header_branch
      %18 = sbr.rel (%p16) target = $region8
    $region5: #{tpu_custom_call.1} parent=1 // loop_body
      %s20 = ssub.s32 %s15, 1
      %s21 = ssub.s32 %s15, 2
      %s28 = sadd.s32 1, %s23
      %p29 = scmp.ge.s32.totalorder %s28, 2
      %s30 = scalar_select %p29, 0, %s28
      %s31 = sadd.s32 1, %s22
      %s32 = scalar_select %p29, %s31, %s22
      %p33 = scmp.ge.s32.totalorder %s32, 2
      %s34 = scalar_select %p33, 0, %s32
      %s35 = ssub.s32 %s22, %s34
      %s36 = ssub.s32 %s23, %s30
      %s37 = sor.u32 %s35, %s36
      %p38 = scmp.eq.s32.totalorder %s37, 0
      %s40 = sadd.s32 %s39, 1
      %s41 = scalar_select %p38, %s39, %s40
      %p44 = pneg %p38
      %p45 = scmp.eq.s32.totalorder %s15, 3
      %p46 = por %p44, %p45
      %p47 = scmp.ne.s32.totalorder %s39, %s42
      %p48 = scmp.eq.s32.totalorder %s15, 0
      %p49 = por %p47, %p48
      %p50 = scmp.ne.s32.totalorder %s39, %s42
      %p51 = scmp.eq.s32.totalorder %s20, 3
      %p52 = por %p50, %p51
      %p53 = scmp.ne.s32.totalorder %s42, %s43
      %p54 = scmp.eq.s32.totalorder %s20, 0
      %p55 = por %p53, %p54
      %p56 = scmp.ne.s32.totalorder %s42, %s43
      %p57 = scmp.eq.s32.totalorder %s21, 3
      %p58 = por %p56, %p57
      %p60 = scmp.ne.s32.totalorder %s43, %s59
      %p61 = scmp.eq.s32.totalorder %s21, 0
      %p62 = por %p60, %p61
      %s64 = sadd.s32 %s63, 1
      %p67 = scmp.eq.s32.totalorder %s15, 3
      %p68 = scmp.ne.s32.totalorder %s63, %s65
      %p69 = scmp.eq.s32.totalorder %s15, 0
      %p70 = por %p68, %p69
      %p71 = scmp.ne.s32.totalorder %s63, %s65
      %p72 = scmp.eq.s32.totalorder %s20, 3
      %p73 = por %p71, %p72
      %p74 = scmp.ne.s32.totalorder %s65, %s66
      %p75 = scmp.eq.s32.totalorder %s20, 0
      %p76 = por %p74, %p75
      %p77 = scmp.ne.s32.totalorder %s65, %s66
      %p78 = scmp.eq.s32.totalorder %s21, 3
      %p79 = por %p77, %p78
      %p81 = scmp.ne.s32.totalorder %s66, %s80
      %p82 = scmp.eq.s32.totalorder %s21, 0
      %p83 = por %p81, %p82
      %s85 = sadd.s32 %s84, 1
      %p88 = scmp.eq.s32.totalorder %s15, 3
      %p89 = scmp.ne.s32.totalorder %s84, %s86
      %p90 = scmp.eq.s32.totalorder %s15, 0
      %p91 = por %p89, %p90
      %p92 = scmp.ne.s32.totalorder %s84, %s86
      %p93 = scmp.eq.s32.totalorder %s20, 3
      %p94 = por %p92, %p93
      %p95 = scmp.ne.s32.totalorder %s86, %s87
      %p96 = scmp.eq.s32.totalorder %s20, 0
      %p97 = por %p95, %p96
      %p98 = scmp.ne.s32.totalorder %s86, %s87
      %p99 = scmp.eq.s32.totalorder %s21, 3
      %p100 = por %p98, %p99
      %p102 = scmp.ne.s32.totalorder %s87, %s101
      %p103 = scmp.eq.s32.totalorder %s21, 0
      %p104 = por %p102, %p103
      %s106 = sadd.s32 %s105, 1
      %p109 = scmp.eq.s32.totalorder %s15, 3
      %p110 = scmp.ne.s32.totalorder %s105, %s107
      %p111 = scmp.eq.s32.totalorder %s15, 0
      %p112 = por %p110, %p111
      %p113 = scmp.ne.s32.totalorder %s105, %s107
      %p114 = scmp.eq.s32.totalorder %s20, 3
      %p115 = por %p113, %p114
      %p116 = scmp.ne.s32.totalorder %s107, %s108
      %p117 = scmp.eq.s32.totalorder %s20, 0
      %p118 = por %p116, %p117
      %p119 = scmp.ne.s32.totalorder %s107, %s108
      %p120 = scmp.eq.s32.totalorder %s21, 3
      %p121 = por %p119, %p120
      %p123 = scmp.ne.s32.totalorder %s108, %s122
      %p124 = scmp.eq.s32.totalorder %s21, 0
      %p125 = por %p123, %p124
      %s127 = sadd.s32 %s126, 1
      %p130 = scmp.eq.s32.totalorder %s15, 3
      %p131 = scmp.ne.s32.totalorder %s126, %s128
      %p132 = scmp.eq.s32.totalorder %s15, 0
      %p133 = por %p131, %p132
      %p134 = scmp.ne.s32.totalorder %s126, %s128
      %p135 = scmp.eq.s32.totalorder %s20, 3
      %p136 = por %p134, %p135
      %p137 = scmp.ne.s32.totalorder %s128, %s129
      %p138 = scmp.eq.s32.totalorder %s20, 0
      %p139 = por %p137, %p138
      %p140 = scmp.ne.s32.totalorder %s128, %s129
      %p141 = scmp.eq.s32.totalorder %s21, 3
      %p142 = por %p140, %p141
      %p144 = scmp.ne.s32.totalorder %s129, %s143
      %p145 = scmp.eq.s32.totalorder %s21, 0
      %p146 = por %p144, %p145
      %s148 = sadd.s32 %s147, 1
      %p151 = scmp.eq.s32.totalorder %s15, 3
      %p152 = scmp.ne.s32.totalorder %s147, %s149
      %p153 = scmp.eq.s32.totalorder %s15, 0
      %p154 = por %p152, %p153
      %p155 = scmp.ne.s32.totalorder %s147, %s149
      %p156 = scmp.eq.s32.totalorder %s20, 3
      %p157 = por %p155, %p156
      %p158 = scmp.ne.s32.totalorder %s149, %s150
      %p159 = scmp.eq.s32.totalorder %s20, 0
      %p160 = por %p158, %p159
      %p161 = scmp.ne.s32.totalorder %s149, %s150
      %p162 = scmp.eq.s32.totalorder %s21, 3
      %p163 = por %p161, %p162
      %p165 = scmp.ne.s32.totalorder %s150, %s164
      %p166 = scmp.eq.s32.totalorder %s21, 0
      %p167 = por %p165, %p166
      %s168 = ssub.s32 %s22, %s34
      %s169 = ssub.s32 %s23, %s30
      %s170 = sor.u32 %s168, %s169
      %p171 = scmp.eq.s32.totalorder %s170, 0
      %s173 = sadd.s32 %s172, 1
      %s174 = scalar_select %p171, %s172, %s173
      %p177 = pneg %p171
      %p178 = scmp.eq.s32.totalorder %s15, 3
      %p179 = por %p177, %p178
      %p180 = scmp.ne.s32.totalorder %s172, %s175
      %p181 = scmp.eq.s32.totalorder %s15, 0
      %p182 = por %p180, %p181
      %p183 = scmp.ne.s32.totalorder %s172, %s175
      %p184 = scmp.eq.s32.totalorder %s20, 3
      %p185 = por %p183, %p184
      %p186 = scmp.ne.s32.totalorder %s175, %s176
      %p187 = scmp.eq.s32.totalorder %s20, 0
      %p188 = por %p186, %p187
      %p189 = scmp.ne.s32.totalorder %s175, %s176
      %p190 = scmp.eq.s32.totalorder %s21, 3
      %p191 = por %p189, %p190
      %p193 = scmp.ne.s32.totalorder %s176, %s192
      %p194 = scmp.eq.s32.totalorder %s21, 0
      %p195 = por %p193, %p194
      %p196 = scmp.le.s32.totalorder 1, %s15
      %p197 = scmp.lt.s32.totalorder %s15, 5
      %p198 = pnand %p196, %p197
      %p199 = pneg %p198
      // Predicated region
      $region9: #{tpu_custom_call.1} parent=5 // pred_check
        _
      $region10: #{tpu_custom_call.1} parent=5 // pred_check_branch
        %201 = sbr.rel (%p198) target = $region12
      $region11: #{tpu_custom_call.1} parent=5 // pred_region
        %s202 = ssub.s32 %s15, 1
        // Predicated region
        $region13: #{tpu_custom_call.1} parent=11 // pred_check
          %p203 = pneg %p76
        $region14: #{tpu_custom_call.1} parent=11 // pred_check_branch
          %205 = sbr.rel (%p203) target = $region16
        $region15: #{tpu_custom_call.1} parent=11 // pred_region
          _
        $region16: #{tpu_custom_call.1} parent=11 // pred_fallthru
          _
        // Predicated region
        $region17: #{tpu_custom_call.1} parent=11 // pred_check
          %p206 = pneg %p97
        $region18: #{tpu_custom_call.1} parent=11 // pred_check_branch
          %208 = sbr.rel (%p206) target = $region20
        $region19: #{tpu_custom_call.1} parent=11 // pred_region
          _
        $region20: #{tpu_custom_call.1} parent=11 // pred_fallthru
          _
        // Predicated region
        $region21: #{tpu_custom_call.1} parent=11 // pred_check
          %p209 = pneg %p118
        $region22: #{tpu_custom_call.1} parent=11 // pred_check_branch
          %211 = sbr.rel (%p209) target = $region24
        $region23: #{tpu_custom_call.1} parent=11 // pred_region
          _
        $region24: #{tpu_custom_call.1} parent=11 // pred_fallthru
          _
        // Predicated region
        $region25: #{tpu_custom_call.1} parent=11 // pred_check
          %p212 = pneg %p139
        $region26: #{tpu_custom_call.1} parent=11 // pred_check_branch
          %214 = sbr.rel (%p212) target = $region28
        $region27: #{tpu_custom_call.1} parent=11 // pred_region
          _
        $region28: #{tpu_custom_call.1} parent=11 // pred_fallthru
          _
        // Predicated region
        $region29: #{tpu_custom_call.1} parent=11 // pred_check
          %p215 = pneg %p160
        $region30: #{tpu_custom_call.1} parent=11 // pred_check_branch
          %217 = sbr.rel (%p215) target = $region32
        $region31: #{tpu_custom_call.1} parent=11 // pred_region
          _
        $region32: #{tpu_custom_call.1} parent=11 // pred_fallthru
          _
      $region12: #{tpu_custom_call.1} parent=5 // pred_fallthru
        _
      %p218 = scmp.lt.s32.totalorder %s15, 4
      // Predicated region
      $region33: #{tpu_custom_call.1} parent=5 // pred_check
        %p219 = pneg %p218
      $region34: #{tpu_custom_call.1} parent=5 // pred_check_branch
        %221 = sbr.rel (%p219) target = $region36
      $region35: #{tpu_custom_call.1} parent=5 // pred_region
        // Predicated region
        $region37: #{tpu_custom_call.1} parent=35 // pred_check
          %p222 = pneg %p49
        $region38: #{tpu_custom_call.1} parent=35 // pred_check_branch
          %224 = sbr.rel (%p222) target = $region40
        $region39: #{tpu_custom_call.1} parent=35 // pred_region
          %s225 = smul.u32 16, %s23
          %p226 = scmp.lt.s32.totalorder %s22, 1
          %s227 = scalar_select %p226, %s22, 1
          %p228 = scmp.lt.s32.totalorder %s225, 31
          %s229 = scalar_select %p228, %s225, 31
          %s230 = smul.addr %s229, 2
          %s231 = smul.addr %s227, 64
          %s232 = sadd.s32 %s230, %s231
          %s233 = smul.addr %s232, 4
          %s234 = scalar_lea.vmem %s0, %s233
          %s235 = smul.u32 16, %s23
        $region40: #{tpu_custom_call.1} parent=35 // pred_fallthru
          _
      $region36: #{tpu_custom_call.1} parent=5 // pred_fallthru
        _
      %p236 = scmp.le.s32.totalorder 1, %s15
      %p237 = scmp.lt.s32.totalorder %s15, 5
      %p238 = pnand %p236, %p237
      %p239 = pneg %p238
      // Predicated region
      $region41: #{tpu_custom_call.1} parent=5 // pred_check
        _
      $region42: #{tpu_custom_call.1} parent=5 // pred_check_branch
        %241 = sbr.rel (%p238) target = $region44
      $region43: #{tpu_custom_call.1} parent=5 // pred_region
        %s242 = ssub.s32 %s15, 1
        %s243 = smul.u32 16, %s25
        %p244 = scmp.lt.s32.totalorder %s24, 1
        %s245 = scalar_select %p244, %s24, 1
        %p246 = scmp.lt.s32.totalorder %s243, 31
        %s247 = scalar_select %p246, %s243, 31
        %s248 = smul.addr %s247, 2
        %s249 = smul.addr %s245, 64
        %s250 = sadd.s32 %s248, %s249
        %s251 = smul.addr %s250, 4
        %s252 = scalar_lea.vmem %s0, %s251
        %p253 = pneg %p55
        %p254 = pneg %p52
        %p255 = pneg %p76
        %p256 = pneg %p73
        %p257 = pneg %p97
        %p258 = pneg %p94
        %p259 = pneg %p118
        %p260 = pneg %p115
        %p261 = pneg %p139
        %p262 = pneg %p136
        %p263 = pneg %p160
        %p264 = pneg %p157
        %p265 = pneg %p188
        %p266 = pneg %p185
        %s267 = sand.u32 %s175, 1
        %s268 = scalar_lea.sflag [#allocation3], %s267
        %s269 = sand.u32 %s175, 1
        %s270 = smul.addr %s269, 32
        %s271 = scalar_lea.vmem [#allocation2], %s270
        %s272 = smul.u32 16, %s25
        %p273 = scmp.lt.s32.totalorder %s24, 1
        %s274 = scalar_select %p273, %s24, 1
        %p275 = scmp.lt.s32.totalorder %s272, 31
        %s276 = scalar_select %p275, %s272, 31
        %s277 = smul.addr %s276, 2
        %s278 = smul.addr %s274, 64
        %s279 = sadd.s32 %s277, %s278
        %s280 = smul.addr %s279, 4
        %s281 = scalar_lea.vmem %s0, %s280
        %s282 = smul.u32 16, %s25
        %v284 = vld [vmem:[%s281] sm:$0xff]
        %v285 = vld [vmem:[%s281 + $0x8] sm:$0xff]
        %v286 = vld [vmem:[%s281 + $0x10] sm:$0xff]
        %v287 = vld [vmem:[%s281 + $0x18] sm:$0xff]
        %v288 = vld [vmem:[%s281 + $0x20] sm:$0xff]
        %v289 = vld [vmem:[%s281 + $0x28] sm:$0xff]
        %v290 = vld [vmem:[%s281 + $0x30] sm:$0xff]
        %v291 = vld [vmem:[%s281 + $0x38] sm:$0xff]
        %v292 = vld [vmem:[%s281 + $0x40] sm:$0xff]
        %v293 = vld [vmem:[%s281 + $0x48] sm:$0xff]
        %v294 = vld [vmem:[%s281 + $0x50] sm:$0xff]
        %v295 = vld [vmem:[%s281 + $0x58] sm:$0xff]
        %v296 = vld [vmem:[%s281 + $0x60] sm:$0xff]
        %v297 = vld [vmem:[%s281 + $0x68] sm:$0xff]
        %v298 = vld [vmem:[%s281 + $0x70] sm:$0xff]
        %v299 = vld [vmem:[%s281 + $0x78] sm:$0xff]
        %v300 = vld [vmem:[%s1] sm:$0xf]
        %v301 = vld [vmem:[%s1 + $0x4] sm:$0xf]
        %v302 = vld [vmem:[%s1 + $0x8] sm:$0xf]
        %v303 = vld [vmem:[%s1 + $0xc] sm:$0xf]
        %v304 = vld [vmem:[%s1 + $0x10] sm:$0xf]
        %v305 = vld [vmem:[%s1 + $0x14] sm:$0xf]
        %v306 = vld [vmem:[%s1 + $0x18] sm:$0xf]
        %v307 = vld [vmem:[%s1 + $0x1c] sm:$0xf]
        %v308 = vld [vmem:[%s1 + $0x20] sm:$0xf]
        %v309 = vld [vmem:[%s1 + $0x24] sm:$0xf]
        %v310 = vld [vmem:[%s1 + $0x28] sm:$0xf]
        %v311 = vld [vmem:[%s1 + $0x2c] sm:$0xf]
        %v312 = vld [vmem:[%s1 + $0x30] sm:$0xf]
        %v313 = vld [vmem:[%s1 + $0x34] sm:$0xf]
        %v314 = vld [vmem:[%s1 + $0x38] sm:$0xf]
        %v315 = vld [vmem:[%s1 + $0x3c] sm:$0xf]
        %v316 = vld [vmem:[%s1 + $0x40] sm:$0xf]
        %v317 = vld [vmem:[%s1 + $0x44] sm:$0xf]
        %v334 = vunpack.c.l.b16 %v284
        %v335 = vunpack.c.h.b16 %v284
        %v336 = vunpack.c.l.b16 %v285
        %v337 = vunpack.c.h.b16 %v285
        %v338 = vunpack.c.l.b16 %v286
        %v339 = vunpack.c.h.b16 %v286
        %v340 = vunpack.c.l.b16 %v287
        %v341 = vunpack.c.h.b16 %v287
        %v342 = vunpack.c.l.b16 %v288
        %v343 = vunpack.c.h.b16 %v288
        %v344 = vunpack.c.l.b16 %v289
        %v345 = vunpack.c.h.b16 %v289
        %v346 = vunpack.c.l.b16 %v290
        %v347 = vunpack.c.h.b16 %v290
        %v348 = vunpack.c.l.b16 %v291
        %v349 = vunpack.c.h.b16 %v291
        %v350 = vunpack.c.l.b16 %v292
        %v351 = vunpack.c.h.b16 %v292
        %v352 = vunpack.c.l.b16 %v293
        %v353 = vunpack.c.h.b16 %v293
        %v354 = vunpack.c.l.b16 %v294
        %v355 = vunpack.c.h.b16 %v294
        %v356 = vunpack.c.l.b16 %v295
        %v357 = vunpack.c.h.b16 %v295
        %v358 = vunpack.c.l.b16 %v296
        %v359 = vunpack.c.h.b16 %v296
        %v360 = vunpack.c.l.b16 %v297
        %v361 = vunpack.c.h.b16 %v297
        %v362 = vunpack.c.l.b16 %v298
        %v363 = vunpack.c.h.b16 %v298
        %v364 = vunpack.c.l.b16 %v299
        %v365 = vunpack.c.h.b16 %v299
        %v366 = vpack.c.b16 %v336, %v334
        %v367 = vpack.c.b16 %v337, %v335
        %v368 = vpack.c.b16 %v340, %v338
        %v369 = vpack.c.b16 %v341, %v339
        %v370 = vpack.c.b16 %v344, %v342
        %v371 = vpack.c.b16 %v345, %v343
        %v372 = vpack.c.b16 %v348, %v346
        %v373 = vpack.c.b16 %v349, %v347
        %v374 = vpack.c.b16 %v352, %v350
        %v375 = vpack.c.b16 %v353, %v351
        %v376 = vpack.c.b16 %v356, %v354
        %v377 = vpack.c.b16 %v357, %v355
        %v378 = vpack.c.b16 %v360, %v358
        %v379 = vpack.c.b16 %v361, %v359
        %v380 = vpack.c.b16 %v364, %v362
        %v381 = vpack.c.b16 %v365, %v363
        %v408 = vunpack.c.l.b16 %v300
        %v409 = vunpack.c.l.b16 %v301
        %v410 = vunpack.c.l.b16 %v302
        %v411 = vunpack.c.l.b16 %v303
        %v412 = vunpack.c.l.b16 %v304
        %v413 = vunpack.c.l.b16 %v305
        %v414 = vunpack.c.l.b16 %v306
        %v415 = vunpack.c.l.b16 %v307
        %v416 = vunpack.c.l.b16 %v308
        %v417 = vunpack.c.l.b16 %v309
        %v418 = vunpack.c.l.b16 %v310
        %v419 = vunpack.c.l.b16 %v311
        %v420 = vunpack.c.l.b16 %v312
        %v421 = vunpack.c.l.b16 %v313
        %v422 = vunpack.c.l.b16 %v314
        %v423 = vunpack.c.l.b16 %v315
        %v424 = vunpack.c.l.b16 %v316
        %v425 = vunpack.c.l.b16 %v317
        %v426 = vpack.c.b16 %v409, %v408
        %v427 = vpack.c.b16 %v411, %v410
        %v428 = vpack.c.b16 %v413, %v412
        %v429 = vpack.c.b16 %v415, %v414
        %v430 = vpack.c.b16 %v417, %v416
        %v431 = vpack.c.b16 %v419, %v418
        %v432 = vpack.c.b16 %v421, %v420
        %v433 = vpack.c.b16 %v423, %v422
        %v434 = vpack.c.b16 %v425, %v424
        %vm444 = vcmask 130048
        %v446 = vsel %vm444, %v367, 0
        %v449 = vsel %vm444, %v369, 0
        %v452 = vsel %vm444, %v371, 0
        %v455 = vsel %vm444, %v373, 0
        %v458 = vsel %vm444, %v375, 0
        %v461 = vsel %vm444, %v377, 0
        %v464 = vsel %vm444, %v379, 0
        %v467 = vsel %vm444, %v381, 0
        %469 = vmatprep.subr.bf16.mxu0 0
        %470 = vmatpush1.bf16.msra.mxu0 %v426
        %471 = vmatprep.subr.bf16.mxu0 0
        %472 = vmatpush1.bf16.msra.mxu0 %v427
        %473 = vmatprep.subr.bf16.mxu0 0
        %474 = vmatpush1.bf16.msra.mxu0 %v428
        %475 = vmatprep.subr.bf16.mxu0 0
        %476 = vmatpush1.bf16.msra.mxu0 %v429
        %477 = vmatprep.subr.bf16.mxu0 0
        %478 = vmatpush1.bf16.msra.mxu0 %v430
        %479 = vmatprep.subr.bf16.mxu0 0
        %480 = vmatpush1.bf16.msra.mxu0 %v431
        %481 = vmatprep.subr.bf16.mxu0 0
        %482 = vmatpush1.bf16.msra.mxu0 %v432
        %483 = vmatprep.subr.bf16.mxu0 0
        %484 = vmatpush1.bf16.msra.mxu0 %v433
        %485 = vmatprep.subr.bf16.mxu0 0
        %486 = vmatpush1.bf16.msra.mxu0 %v434
        %487 = vmatprep.subr.bf16.mxu0 0
        %488 = vmatpush1.bf16.msra.mxu0 0
        %489 = vmatprep.subr.bf16.mxu0 0
        %490 = vmatpush1.bf16.msra.mxu0 0
        %491 = vmatprep.subr.bf16.mxu0 0
        %492 = vmatpush1.bf16.msra.mxu0 0
        %493 = vmatprep.subr.bf16.mxu0 0
        %494 = vmatpush1.bf16.msra.mxu0 0
        %495 = vmatprep.subr.bf16.mxu0 0
        %496 = vmatpush1.bf16.msra.mxu0 0
        %497 = vmatprep.subr.bf16.mxu0 0
        %498 = vmatpush1.bf16.msra.mxu0 0
        %499 = vmatprep.subr.bf16.mxu0 0
        %500 = vmatpush1.bf16.msra.mxu0 0
        %501 = vmatprep.mubr.bf16.mxu0 %v446
        %502 = vmatmul.mubr.bf16.gmra.mrb[0].mxu0 %v366
        %v503 = vpop.f32.mrb[0].mxu0
        %v504 = vadd.f32 0.0, %v503
        %v505 = vpop.f32.mrb[0].mxu0
        %v506 = vpop.f32.mrb[0].mxu0
        %v507 = vadd.f32 0.0, %v506
        %v508 = vpop.f32.mrb[0].mxu0
        %509 = vmatprep.mubr.bf16.mxu0 %v449
        %510 = vmatmul.mubr.bf16.gmra.mrb[0].mxu0 %v368
        %v511 = vpop.f32.mrb[0].mxu0
        %v512 = vadd.f32 0.0, %v511
        %v513 = vpop.f32.mrb[0].mxu0
        %v514 = vpop.f32.mrb[0].mxu0
        %v515 = vadd.f32 0.0, %v514
        %v516 = vpop.f32.mrb[0].mxu0
        %517 = vmatprep.mubr.bf16.mxu0 %v452
        %518 = vmatmul.mubr.bf16.gmra.mrb[0].mxu0 %v370
        %v519 = vpop.f32.mrb[0].mxu0
        %v520 = vadd.f32 0.0, %v519
        %v521 = vpop.f32.mrb[0].mxu0
        %v522 = vpop.f32.mrb[0].mxu0
        %v523 = vadd.f32 0.0, %v522
        %v524 = vpop.f32.mrb[0].mxu0
        %525 = vmatprep.mubr.bf16.mxu0 %v455
        %526 = vmatmul.mubr.bf16.gmra.mrb[0].mxu0 %v372
        %v527 = vpop.f32.mrb[0].mxu0
        %v528 = vadd.f32 0.0, %v527
        %v529 = vpop.f32.mrb[0].mxu0
        %v530 = vpop.f32.mrb[0].mxu0
        %v531 = vadd.f32 0.0, %v530
        %v532 = vpop.f32.mrb[0].mxu0
        %533 = vmatprep.mubr.bf16.mxu0 %v458
        %534 = vmatmul.mubr.bf16.gmra.mrb[0].mxu0 %v374
        %v535 = vpop.f32.mrb[0].mxu0
        %v536 = vadd.f32 0.0, %v535
        %v537 = vpop.f32.mrb[0].mxu0
        %v538 = vpop.f32.mrb[0].mxu0
        %v539 = vadd.f32 0.0, %v538
        %v540 = vpop.f32.mrb[0].mxu0
        %541 = vmatprep.mubr.bf16.mxu0 %v461
        %542 = vmatmul.mubr.bf16.gmra.mrb[0].mxu0 %v376
        %v543 = vpop.f32.mrb[0].mxu0
        %v544 = vadd.f32 0.0, %v543
        %v545 = vpop.f32.mrb[0].mxu0
        %v546 = vpop.f32.mrb[0].mxu0
        %v547 = vadd.f32 0.0, %v546
        %v548 = vpop.f32.mrb[0].mxu0
        %549 = vmatprep.mubr.bf16.mxu0 %v464
        %550 = vmatmul.mubr.bf16.gmra.mrb[0].mxu0 %v378
        %v551 = vpop.f32.mrb[0].mxu0
        %v552 = vadd.f32 0.0, %v551
        %v553 = vpop.f32.mrb[0].mxu0
        %v554 = vpop.f32.mrb[0].mxu0
        %v555 = vadd.f32 0.0, %v554
        %v556 = vpop.f32.mrb[0].mxu0
        %557 = vmatprep.mubr.bf16.mxu0 %v467
        %558 = vmatmul.mubr.bf16.gmra.mrb[0].mxu0 %v380
        %v559 = vpop.f32.mrb[0].mxu0
        %v560 = vadd.f32 0.0, %v559
        %v561 = vpop.f32.mrb[0].mxu0
        %v562 = vpop.f32.mrb[0].mxu0
        %v563 = vadd.f32 0.0, %v562
        %v564 = vpop.f32.mrb[0].mxu0
        %565 = vdwg.mxu0
        %v566 = vld [vmem:[%s2] sm:$0x1]
        %v568 = vlaneseq
        %v569 = vshrl.u32 %v568, 7
        %v570 = vsub.s32 0, %v569
        %v571 = vrot.slane %v566, %v570
        %v573 = vmul.f32 %v504, %v571
        %v574 = vmul.f32 %v507, %v571
        %v575 = vmul.f32 %v512, %v571
        %v576 = vmul.f32 %v515, %v571
        %v577 = vmul.f32 %v520, %v571
        %v578 = vmul.f32 %v523, %v571
        %v579 = vmul.f32 %v528, %v571
        %v580 = vmul.f32 %v531, %v571
        %v581 = vmul.f32 %v536, %v571
        %v582 = vmul.f32 %v539, %v571
        %v583 = vmul.f32 %v544, %v571
        %v584 = vmul.f32 %v547, %v571
        %v585 = vmul.f32 %v552, %v571
        %v586 = vmul.f32 %v555, %v571
        %v587 = vmul.f32 %v560, %v571
        %v588 = vmul.f32 %v563, %v571
        %v589 = vld [vmem:[%s3] sm:$0x1]
        %v591 = vlaneseq
        %v592 = vshrl.u32 %v591, 7
        %v593 = vsub.s32 0, %v592
        %v594 = vrot.slane %v589, %v593
        %v596 = vadd.f32 %v573, %v594
        %v597 = vadd.f32 %v574, %v594
        %v598 = vadd.f32 %v575, %v594
        %v599 = vadd.f32 %v576, %v594
        %v600 = vadd.f32 %v577, %v594
        %v601 = vadd.f32 %v578, %v594
        %v602 = vadd.f32 %v579, %v594
        %v603 = vadd.f32 %v580, %v594
        %v604 = vadd.f32 %v581, %v594
        %v605 = vadd.f32 %v582, %v594
        %v606 = vadd.f32 %v583, %v594
        %v607 = vadd.f32 %v584, %v594
        %v608 = vadd.f32 %v585, %v594
        %v609 = vadd.f32 %v586, %v594
        %v610 = vadd.f32 %v587, %v594
        %v611 = vadd.f32 %v588, %v594
        %v612 = vmax.f32 %v596, 0.0
        %v613 = vmax.f32 %v597, 0.0
        %v614 = vmax.f32 %v598, 0.0
        %v615 = vmax.f32 %v599, 0.0
        %v616 = vmax.f32 %v600, 0.0
        %v617 = vmax.f32 %v601, 0.0
        %v618 = vmax.f32 %v602, 0.0
        %v619 = vmax.f32 %v603, 0.0
        %v620 = vmax.f32 %v604, 0.0
        %v621 = vmax.f32 %v605, 0.0
        %v622 = vmax.f32 %v606, 0.0
        %v623 = vmax.f32 %v607, 0.0
        %v624 = vmax.f32 %v608, 0.0
        %v625 = vmax.f32 %v609, 0.0
        %v626 = vmax.f32 %v610, 0.0
        %v627 = vmax.f32 %v611, 0.0
        %v628 = vpack.c.bf16 %v613, %v612
        %v629 = vpack.c.bf16 %v615, %v614
        %v630 = vpack.c.bf16 %v617, %v616
        %v631 = vpack.c.bf16 %v619, %v618
        %v632 = vpack.c.bf16 %v621, %v620
        %v633 = vpack.c.bf16 %v623, %v622
        %v634 = vpack.c.bf16 %v625, %v624
        %v635 = vpack.c.bf16 %v627, %v626
        %v636 = vld [vmem:[%s4] sm:$0xf]
        %v637 = vld [vmem:[%s4 + $0x4] sm:$0xf]
        %v638 = vld [vmem:[%s4 + $0x8] sm:$0xf]
        %v639 = vld [vmem:[%s4 + $0xc] sm:$0xf]
        %v640 = vld [vmem:[%s4 + $0x10] sm:$0xf]
        %v641 = vld [vmem:[%s4 + $0x14] sm:$0xf]
        %v642 = vld [vmem:[%s4 + $0x18] sm:$0xf]
        %v643 = vld [vmem:[%s4 + $0x1c] sm:$0xf]
        %v644 = vld [vmem:[%s4 + $0x20] sm:$0xf]
        %v645 = vld [vmem:[%s4 + $0x24] sm:$0xf]
        %v646 = vld [vmem:[%s4 + $0x28] sm:$0xf]
        %v647 = vld [vmem:[%s4 + $0x2c] sm:$0xf]
        %v648 = vld [vmem:[%s4 + $0x30] sm:$0xf]
        %v649 = vld [vmem:[%s4 + $0x34] sm:$0xf]
        %v650 = vld [vmem:[%s4 + $0x38] sm:$0xf]
        %v651 = vld [vmem:[%s4 + $0x3c] sm:$0xf]
        %v652 = vld [vmem:[%s5] sm:$0x1]
        %v654 = vlaneseq
        %v655 = vshrl.u32 %v654, 7
        %v656 = vsub.s32 0, %v655
        %v657 = vrot.slane %v652, %v656
        %v675 = vunpack.c.l.b16 %v636
        %v676 = vunpack.c.l.b16 %v637
        %v677 = vunpack.c.l.b16 %v638
        %v678 = vunpack.c.l.b16 %v639
        %v679 = vunpack.c.l.b16 %v640
        %v680 = vunpack.c.l.b16 %v641
        %v681 = vunpack.c.l.b16 %v642
        %v682 = vunpack.c.l.b16 %v643
        %v683 = vunpack.c.l.b16 %v644
        %v684 = vunpack.c.l.b16 %v645
        %v685 = vunpack.c.l.b16 %v646
        %v686 = vunpack.c.l.b16 %v647
        %v687 = vunpack.c.l.b16 %v648
        %v688 = vunpack.c.l.b16 %v649
        %v689 = vunpack.c.l.b16 %v650
        %v690 = vunpack.c.l.b16 %v651
        %v691 = vpack.c.b16 %v676, %v675
        %v692 = vpack.c.b16 %v678, %v677
        %v693 = vpack.c.b16 %v680, %v679
        %v694 = vpack.c.b16 %v682, %v681
        %v695 = vpack.c.b16 %v684, %v683
        %v696 = vpack.c.b16 %v686, %v685
        %v697 = vpack.c.b16 %v688, %v687
        %v698 = vpack.c.b16 %v690, %v689
        %707 = vmatprep.subr.bf16.mxu0 0
        %708 = vmatpush1.bf16.msra.mxu0 %v691
        %709 = vmatprep.subr.bf16.mxu0 0
        %710 = vmatpush1.bf16.msra.mxu0 %v692
        %711 = vmatprep.subr.bf16.mxu0 0
        %712 = vmatpush1.bf16.msra.mxu0 %v693
        %713 = vmatprep.subr.bf16.mxu0 0
        %714 = vmatpush1.bf16.msra.mxu0 %v694
        %715 = vmatprep.subr.bf16.mxu0 0
        %716 = vmatpush1.bf16.msra.mxu0 %v695
        %717 = vmatprep.subr.bf16.mxu0 0
        %718 = vmatpush1.bf16.msra.mxu0 %v696
        %719 = vmatprep.subr.bf16.mxu0 0
        %720 = vmatpush1.bf16.msra.mxu0 %v697
        %721 = vmatprep.subr.bf16.mxu0 0
        %722 = vmatpush1.bf16.msra.mxu0 %v698
        %723 = vmatprep.subr.bf16.mxu0 0
        %724 = vmatpush1.bf16.msra.mxu0 0
        %725 = vmatprep.subr.bf16.mxu0 0
        %726 = vmatpush1.bf16.msra.mxu0 0
        %727 = vmatprep.subr.bf16.mxu0 0
        %728 = vmatpush1.bf16.msra.mxu0 0
        %729 = vmatprep.subr.bf16.mxu0 0
        %730 = vmatpush1.bf16.msra.mxu0 0
        %731 = vmatprep.subr.bf16.mxu0 0
        %732 = vmatpush1.bf16.msra.mxu0 0
        %733 = vmatprep.subr.bf16.mxu0 0
        %734 = vmatpush1.bf16.msra.mxu0 0
        %735 = vmatprep.subr.bf16.mxu0 0
        %736 = vmatpush1.bf16.msra.mxu0 0
        %737 = vmatprep.subr.bf16.mxu0 0
        %738 = vmatpush1.bf16.msra.mxu0 0
        %739 = vmatprep.mubr.bf16.mxu0 0
        %740 = vmatmul.mubr.bf16.gmra.mrb[0].mxu0 %v628
        %v741 = vpop.f32.mrb[0].mxu0
        %v742 = vadd.f32 %v657, %v741
        %v743 = vpop.f32.mrb[0].mxu0
        %v744 = vpop.f32.mrb[0].mxu0
        %v745 = vadd.f32 %v657, %v744
        %v746 = vpop.f32.mrb[0].mxu0
        %747 = vmatprep.mubr.bf16.mxu0 0
        %748 = vmatmul.mubr.bf16.gmra.mrb[0].mxu0 %v629
        %v749 = vpop.f32.mrb[0].mxu0
        %v750 = vadd.f32 %v657, %v749
        %v751 = vpop.f32.mrb[0].mxu0
        %v752 = vpop.f32.mrb[0].mxu0
        %v753 = vadd.f32 %v657, %v752
        %v754 = vpop.f32.mrb[0].mxu0
        %755 = vmatprep.mubr.bf16.mxu0 0
        %756 = vmatmul.mubr.bf16.gmra.mrb[0].mxu0 %v630
        %v757 = vpop.f32.mrb[0].mxu0
        %v758 = vadd.f32 %v657, %v757
        %v759 = vpop.f32.mrb[0].mxu0
        %v760 = vpop.f32.mrb[0].mxu0
        %v761 = vadd.f32 %v657, %v760
        %v762 = vpop.f32.mrb[0].mxu0
        %763 = vmatprep.mubr.bf16.mxu0 0
        %764 = vmatmul.mubr.bf16.gmra.mrb[0].mxu0 %v631
        %v765 = vpop.f32.mrb[0].mxu0
        %v766 = vadd.f32 %v657, %v765
        %v767 = vpop.f32.mrb[0].mxu0
        %v768 = vpop.f32.mrb[0].mxu0
        %v769 = vadd.f32 %v657, %v768
        %v770 = vpop.f32.mrb[0].mxu0
        %771 = vmatprep.mubr.bf16.mxu0 0
        %772 = vmatmul.mubr.bf16.gmra.mrb[0].mxu0 %v632
        %v773 = vpop.f32.mrb[0].mxu0
        %v774 = vadd.f32 %v657, %v773
        %v775 = vpop.f32.mrb[0].mxu0
        %v776 = vpop.f32.mrb[0].mxu0
        %v777 = vadd.f32 %v657, %v776
        %v778 = vpop.f32.mrb[0].mxu0
        %779 = vmatprep.mubr.bf16.mxu0 0
        %780 = vmatmul.mubr.bf16.gmra.mrb[0].mxu0 %v633
        %v781 = vpop.f32.mrb[0].mxu0
        %v782 = vadd.f32 %v657, %v781
        %v783 = vpop.f32.mrb[0].mxu0
        %v784 = vpop.f32.mrb[0].mxu0
        %v785 = vadd.f32 %v657, %v784
        %v786 = vpop.f32.mrb[0].mxu0
        %787 = vmatprep.mubr.bf16.mxu0 0
        %788 = vmatmul.mubr.bf16.gmra.mrb[0].mxu0 %v634
        %v789 = vpop.f32.mrb[0].mxu0
        %v790 = vadd.f32 %v657, %v789
        %v791 = vpop.f32.mrb[0].mxu0
        %v792 = vpop.f32.mrb[0].mxu0
        %v793 = vadd.f32 %v657, %v792
        %v794 = vpop.f32.mrb[0].mxu0
        %795 = vmatprep.mubr.bf16.mxu0 0
        %796 = vmatmul.mubr.bf16.gmra.mrb[0].mxu0 %v635
        %v797 = vpop.f32.mrb[0].mxu0
        %v798 = vadd.f32 %v657, %v797
        %v799 = vpop.f32.mrb[0].mxu0
        %v800 = vpop.f32.mrb[0].mxu0
        %v801 = vadd.f32 %v657, %v800
        %v802 = vpop.f32.mrb[0].mxu0
        %803 = vdwg.mxu0
        %v804 = vlaneseq
        %v805 = vand.u32 %v804, 127
        %v806 = vxor.u32 %v742, 2147483648
        %v807 = vxor.u32 %v745, 2147483648
        %v808 = vxor.u32 %v750, 2147483648
        %v809 = vxor.u32 %v753, 2147483648
        %v810 = vxor.u32 %v758, 2147483648
        %v811 = vxor.u32 %v761, 2147483648
        %v812 = vxor.u32 %v766, 2147483648
        %v813 = vxor.u32 %v769, 2147483648
        %v814 = vxor.u32 %v774, 2147483648
        %v815 = vxor.u32 %v777, 2147483648
        %v816 = vxor.u32 %v782, 2147483648
        %v817 = vxor.u32 %v785, 2147483648
        %v818 = vxor.u32 %v790, 2147483648
        %v819 = vxor.u32 %v793, 2147483648
        %v820 = vxor.u32 %v798, 2147483648
        %v821 = vxor.u32 %v801, 2147483648
        %v822 = vmul.f32 %v806, 1.442695
        %v823 = vpow.pop %v822
        %v824 = vmul.f32 %v807, 1.442695
        %v825 = vpow.pop %v824
        %v826 = vmul.f32 %v808, 1.442695
        %v827 = vpow.pop %v826
        %v828 = vmul.f32 %v809, 1.442695
        %v829 = vpow.pop %v828
        %v830 = vmul.f32 %v810, 1.442695
        %v831 = vpow.pop %v830
        %v832 = vmul.f32 %v811, 1.442695
        %v833 = vpow.pop %v832
        %v834 = vmul.f32 %v812, 1.442695
        %v835 = vpow.pop %v834
        %v836 = vmul.f32 %v813, 1.442695
        %v837 = vpow.pop %v836
        %v838 = vmul.f32 %v814, 1.442695
        %v839 = vpow.pop %v838
        %v840 = vmul.f32 %v815, 1.442695
        %v841 = vpow.pop %v840
        %v842 = vmul.f32 %v816, 1.442695
        %v843 = vpow.pop %v842
        %v844 = vmul.f32 %v817, 1.442695
        %v845 = vpow.pop %v844
        %v846 = vmul.f32 %v818, 1.442695
        %v847 = vpow.pop %v846
        %v848 = vmul.f32 %v819, 1.442695
        %v849 = vpow.pop %v848
        %v850 = vmul.f32 %v820, 1.442695
        %v851 = vpow.pop %v850
        %v852 = vmul.f32 %v821, 1.442695
        %v853 = vpow.pop %v852
        %v854 = vadd.f32 %v823, 1.0
        %v855 = vadd.f32 %v825, 1.0
        %v856 = vadd.f32 %v827, 1.0
        %v857 = vadd.f32 %v829, 1.0
        %v858 = vadd.f32 %v831, 1.0
        %v859 = vadd.f32 %v833, 1.0
        %v860 = vadd.f32 %v835, 1.0
        %v861 = vadd.f32 %v837, 1.0
        %v862 = vadd.f32 %v839, 1.0
        %v863 = vadd.f32 %v841, 1.0
        %v864 = vadd.f32 %v843, 1.0
        %v865 = vadd.f32 %v845, 1.0
        %v866 = vadd.f32 %v847, 1.0
        %v867 = vadd.f32 %v849, 1.0
        %v868 = vadd.f32 %v851, 1.0
        %v869 = vadd.f32 %v853, 1.0
        %v870 = vrcp.pop %v854
        %v871 = vmul.f32 1.0, %v870
        %v872 = vrcp.pop %v855
        %v873 = vmul.f32 1.0, %v872
        %v874 = vrcp.pop %v856
        %v875 = vmul.f32 1.0, %v874
        %v876 = vrcp.pop %v857
        %v877 = vmul.f32 1.0, %v876
        %v878 = vrcp.pop %v858
        %v879 = vmul.f32 1.0, %v878
        %v880 = vrcp.pop %v859
        %v881 = vmul.f32 1.0, %v880
        %v882 = vrcp.pop %v860
        %v883 = vmul.f32 1.0, %v882
        %v884 = vrcp.pop %v861
        %v885 = vmul.f32 1.0, %v884
        %v886 = vrcp.pop %v862
        %v887 = vmul.f32 1.0, %v886
        %v888 = vrcp.pop %v863
        %v889 = vmul.f32 1.0, %v888
        %v890 = vrcp.pop %v864
        %v891 = vmul.f32 1.0, %v890
        %v892 = vrcp.pop %v865
        %v893 = vmul.f32 1.0, %v892
        %v894 = vrcp.pop %v866
        %v895 = vmul.f32 1.0, %v894
        %v896 = vrcp.pop %v867
        %v897 = vmul.f32 1.0, %v896
        %v898 = vrcp.pop %v868
        %v899 = vmul.f32 1.0, %v898
        %v900 = vrcp.pop %v869
        %v901 = vmul.f32 1.0, %v900
        %v902 = vmax.f32 %v871, 0.0001
        %v903 = vmax.f32 %v873, 0.0001
        %v904 = vmax.f32 %v875, 0.0001
        %v905 = vmax.f32 %v877, 0.0001
        %v906 = vmax.f32 %v879, 0.0001
        %v907 = vmax.f32 %v881, 0.0001
        %v908 = vmax.f32 %v883, 0.0001
        %v909 = vmax.f32 %v885, 0.0001
        %v910 = vmax.f32 %v887, 0.0001
        %v911 = vmax.f32 %v889, 0.0001
        %v912 = vmax.f32 %v891, 0.0001
        %v913 = vmax.f32 %v893, 0.0001
        %v914 = vmax.f32 %v895, 0.0001
        %v915 = vmax.f32 %v897, 0.0001
        %v916 = vmax.f32 %v899, 0.0001
        %v917 = vmax.f32 %v901, 0.0001
        %v918 = vmin.f32 %v902, 0.9999
        %v919 = vmin.f32 %v903, 0.9999
        %v920 = vmin.f32 %v904, 0.9999
        %v921 = vmin.f32 %v905, 0.9999
        %v922 = vmin.f32 %v906, 0.9999
        %v923 = vmin.f32 %v907, 0.9999
        %v924 = vmin.f32 %v908, 0.9999
        %v925 = vmin.f32 %v909, 0.9999
        %v926 = vmin.f32 %v910, 0.9999
        %v927 = vmin.f32 %v911, 0.9999
        %v928 = vmin.f32 %v912, 0.9999
        %v929 = vmin.f32 %v913, 0.9999
        %v930 = vmin.f32 %v914, 0.9999
        %v931 = vmin.f32 %v915, 0.9999
        %v932 = vmin.f32 %v916, 0.9999
        %v933 = vmin.f32 %v917, 0.9999
        %vm934 = vcmp.lt.s32.totalorder %v805, 3
        %v935 = vsel %vm934, %v918, %v742
        %v936 = vsel %vm934, %v919, %v745
        %v937 = vsel %vm934, %v920, %v750
        %v938 = vsel %vm934, %v921, %v753
        %v939 = vsel %vm934, %v922, %v758
        %v940 = vsel %vm934, %v923, %v761
        %v941 = vsel %vm934, %v924, %v766
        %v942 = vsel %vm934, %v925, %v769
        %v943 = vsel %vm934, %v926, %v774
        %v944 = vsel %vm934, %v927, %v777
        %v945 = vsel %vm934, %v928, %v782
        %v946 = vsel %vm934, %v929, %v785
        %v947 = vsel %vm934, %v930, %v790
        %v948 = vsel %vm934, %v931, %v793
        %v949 = vsel %vm934, %v932, %v798
        %v950 = vsel %vm934, %v933, %v801
        %951 = vxpose.xlu0.b32.start [1/16] %v935, 128
        %952 = vxpose.xlu0.b32.cont [2/16] %v936, 128
        %953 = vxpose.xlu0.b32.cont [3/16] %v937, 128
        %954 = vxpose.xlu0.b32.cont [4/16] %v938, 128
        %955 = vxpose.xlu0.b32.cont [5/16] %v939, 128
        %956 = vxpose.xlu0.b32.cont [6/16] %v940, 128
        %957 = vxpose.xlu0.b32.cont [7/16] %v941, 128
        %958 = vxpose.xlu0.b32.cont [8/16] %v942, 128
        %959 = vxpose.xlu0.b32.cont [9/16] %v943, 128
        %960 = vxpose.xlu0.b32.cont [10/16] %v944, 128
        %961 = vxpose.xlu0.b32.cont [11/16] %v945, 128
        %962 = vxpose.xlu0.b32.cont [12/16] %v946, 128
        %963 = vxpose.xlu0.b32.cont [13/16] %v947, 128
        %964 = vxpose.xlu0.b32.cont [14/16] %v948, 128
        %965 = vxpose.xlu0.b32.cont [15/16] %v949, 128
        %966 = vxpose.xlu0.b32.end [16/16] %v950, 128
        %v967 = vpop.trf.xlu0
        %v968 = vpop.trf.xlu0
        %v969 = vpop.trf.xlu0
        %v970 = vpop.trf.xlu0
        %v971 = vpop.trf.xlu0
        %v972 = vpop.trf.xlu0
        %v973 = vpop.trf.xlu0
        %v974 = vpop.trf.xlu0
        %v975 = vpop.trf.xlu0
        %v976 = vpop.trf.xlu0
        %v977 = vpop.trf.xlu0
        %v978 = vpop.trf.xlu0
        %v979 = vpop.trf.xlu0
        %v980 = vpop.trf.xlu0
        %v981 = vpop.trf.xlu0
        %v982 = vpop.trf.xlu0
        %983 = vst [vmem:[%s271] sm:$0xff] %v967
        %984 = vst [vmem:[%s271 + $0x8] sm:$0xff] %v968
        %985 = vst [vmem:[%s271 + $0x10] sm:$0xff] %v969
        %986 = vst [vmem:[%s271 + $0x18] sm:$0xff] %v970
        %s987 = sand.u32 %s175, 1
        %s988 = scalar_lea.sflag [#allocation3], %s987
        %s989 = sand.u32 %s175, 1
        %s990 = smul.addr %s989, 32
        %s991 = scalar_lea.vmem [#allocation2], %s990
        // Predicated region
        $region45: #{tpu_custom_call.1} parent=43 // pred_check
          %p992 = pneg %p185
        $region46: #{tpu_custom_call.1} parent=43 // pred_check_branch
          %994 = sbr.rel (%p992) target = $region48
        $region47: #{tpu_custom_call.1} parent=43 // pred_region
          %s996 = ssub.s32 512, 512
          %997 = vsyncadd %s988, %s996
          %s998 = smul.addr %s24, 8
          %s999 = sadd.s32 %s25, %s998
          %s1000 = smul.addr %s999, 128
          %s1001 = scalar_lea.hbm %s6, %s1000
          %s1002 = sshll.u32 %s991, 4
          %s1003 = int_to_ptr.vmem [resolvable:$true] %s1002
          %1008 = dma.vmem_to_hbm [thread:$0]  %s1003, 512, %s1001, %s988, 128, 256, 8
        $region48: #{tpu_custom_call.1} parent=43 // pred_fallthru
          _
      $region44: #{tpu_custom_call.1} parent=5 // pred_fallthru
        _
      %p1009 = scmp.le.s32.totalorder 2, %s15
      // Predicated region
      $region49: #{tpu_custom_call.1} parent=5 // pred_check
        %p1010 = pneg %p1009
      $region50: #{tpu_custom_call.1} parent=5 // pred_check_branch
        %1012 = sbr.rel (%p1010) target = $region52
      $region51: #{tpu_custom_call.1} parent=5 // pred_region
        %s1013 = ssub.s32 %s15, 2
        // Predicated region
        $region53: #{tpu_custom_call.1} parent=51 // pred_check
          %p1014 = pneg %p191
        $region54: #{tpu_custom_call.1} parent=51 // pred_check_branch
          %1016 = sbr.rel (%p1014) target = $region56
        $region55: #{tpu_custom_call.1} parent=51 // pred_region
          %s1017 = sand.u32 %s176, 1
          %s1018 = scalar_lea.sflag [#allocation3], %s1017
          %s1019 = sand.u32 %s176, 1
          %s1020 = smul.addr %s1019, 32
          %s1021 = scalar_lea.vmem [#allocation2], %s1020
          %1022 = dma.done %s1018, 512
        $region56: #{tpu_custom_call.1} parent=51 // pred_fallthru
          _
      $region52: #{tpu_custom_call.1} parent=5 // pred_fallthru
        _
    $region6: #{tpu_custom_call.1} parent=1 // loop_footer
      %s19 = sadd.s32 1, %s15
    $region7: #{tpu_custom_call.1} parent=1 // loop_footer_branch
      %14 = sbr.rel target = $region3
    $region8: #{tpu_custom_call.1} parent=1 // loop_exit
      _
    %1023 = vsyncpa [#allocation3], 1
    %s1024 = scalar_lea.sflag [#allocation3], 1
    %1025 = vsyncpa %s1024, 1

</llo_original>
